<compile_context>
chip_gen: v7x
topology: tpu7x:2x2x1
jax: 0.10.0
libtpu: 0.0.40
codegen_flags: <defaults>
</compile_context>

<pallas_src>
import functools

import jax
import jax.numpy as jnp
from jax.experimental import pallas as pl
from jax.experimental.pallas import tpu as pltpu


def _round_up(n, m):
    return ((n + m - 1) // m) * m


def _pad_axis(a, axis, target):
    pad = target - a.shape[axis]
    if pad <= 0:
        return a
    widths = [(0, 0)] * a.ndim
    widths[axis] = (0, pad)
    return jnp.pad(a, widths)


def _flow_kernel(x_ref, c_ref, w_ref, b_ref, o_ref, *, num_layers, d_pad):
    """One row tile: single fused conditioner matmul + L affine flow updates."""
    x = x_ref[...].astype(jnp.float32)                         # (TR, Dp)   f32
    c = c_ref[...]                                             # (TR, Dcp)  bf16
    # One MXU matmul produces the packed [s_0..s_{L-1} | t_0..t_{L-1}] slab.
    st = jnp.dot(c, w_ref[...], preferred_element_type=jnp.float32)
    st = st + b_ref[...]                                       # single broadcast add
    for l in range(num_layers):                                # small, compile-time L
        s = st[:, l * d_pad:(l + 1) * d_pad]                   # static 128-aligned slices
        t = st[:, (num_layers + l) * d_pad:(num_layers + l + 1) * d_pad]
        x = x * jnp.exp(jnp.tanh(s)) + t                       # VPU + EUP (2 transc./layer)
    o_ref[...] = x.astype(o_ref.dtype)


def conditional_transformed_forward(x, cond_var, ws, bs, wt, bt, *, row_tile=256):
    """
    x        : [B, S, D]   float32
    cond_var : [B, S, Dc]  float32
    ws, wt   : [L, Dc, D]  float32   (per-layer conditioner weights)
    bs, bt   : [L, 1,  D]  float32   (per-layer conditioner biases)
    returns  : [B, S, D]   float32   (z = composed flow(x | cond))
    """
    B, S, D = x.shape
    Dc = cond_var.shape[-1]
    L = ws.shape[0]
    N = B * S

    # Lane-dense padding: feature dims up to multiples of 128 (zero-filled).
    Dp = _round_up(D, 128)
    Dcp = _round_up(Dc, 128)

    # Row tiling: big tiles, but never much bigger than the problem; keep a
    # multiple of 16 (bf16 sublane tile). Row padding handles N % tr != 0.
    tr = _round_up(min(row_tile, _round_up(N, 16)), 16)
    Np = _round_up(N, tr)

    # --- host-side packing -------------------------------------------------
    x2 = _pad_axis(_pad_axis(x.reshape(N, D), 1, Dp), 0, Np).astype(jnp.float32)
    c2 = _pad_axis(_pad_axis(cond_var.reshape(N, Dc), 1, Dcp), 0, Np)
    c2 = c2.astype(jnp.bfloat16)

    # W_all : (Dcp, 2*L*Dp) with column layout [s_0 .. s_{L-1} | t_0 .. t_{L-1}]
    ws_p = _pad_axis(_pad_axis(ws, 2, Dp), 1, Dcp)            # (L, Dcp, Dp)
    wt_p = _pad_axis(_pad_axis(wt, 2, Dp), 1, Dcp)
    w_all = jnp.concatenate(
        [jnp.transpose(ws_p, (1, 0, 2)).reshape(Dcp, L * Dp),
         jnp.transpose(wt_p, (1, 0, 2)).reshape(Dcp, L * Dp)], axis=1)
    w_all = w_all.astype(jnp.bfloat16)

    bs_p = _pad_axis(bs, 2, Dp).reshape(L * Dp)
    bt_p = _pad_axis(bt, 2, Dp).reshape(L * Dp)
    b_all = jnp.concatenate([bs_p, bt_p]).reshape(1, 2 * L * Dp).astype(jnp.float32)

    kernel = functools.partial(_flow_kernel, num_layers=L, d_pad=Dp)

    cost = pl.CostEstimate(
        flops=2 * Np * Dcp * (2 * L * Dp) + 3 * L * Np * Dp,
        transcendentals=2 * L * Np * Dp,
        bytes_accessed=(x2.size * 4 + c2.size * 2 + w_all.size * 2
                        + b_all.size * 4 + Np * Dp * 4),
    )
    # VMEM budget: double-buffered x/cond/out tiles + resident weights + st slab.
    vmem_bytes = (2 * (tr * Dp * 4 + tr * Dcp * 2 + tr * Dp * 4)
                  + w_all.size * 2 + b_all.size * 4 + tr * 2 * L * Dp * 4)
    vmem_limit = int(min(64 * 1024 * 1024, max(32 * 1024 * 1024, 2 * vmem_bytes)))

    out2 = pl.pallas_call(
        kernel,
        out_shape=jax.ShapeDtypeStruct((Np, Dp), jnp.float32),
        grid=(Np // tr,),
        in_specs=[
            pl.BlockSpec((tr, Dp), lambda i: (i, 0)),             # x tile (f32)
            pl.BlockSpec((tr, Dcp), lambda i: (i, 0)),            # cond tile (bf16)
            pl.BlockSpec((Dcp, 2 * L * Dp), lambda i: (0, 0)),    # packed weights (resident)
            pl.BlockSpec((1, 2 * L * Dp), lambda i: (0, 0)),      # packed biases (resident)
        ],
        out_specs=pl.BlockSpec((tr, Dp), lambda i: (i, 0)),       # lane-dense output
        compiler_params=pltpu.CompilerParams(
            dimension_semantics=("parallel",),
            vmem_limit_bytes=vmem_limit),
        cost_estimate=cost,
    )(x2, c2, w_all, b_all)

    return out2[:N, :D].reshape(B, S, D)


def _reference_forward(x, cond_var, ws, bs, wt, bt):
    """Pure-JAX reference with matching mixed precision (bf16 matmul, f32 acc)."""
    L = ws.shape[0]
    z = x.astype(jnp.float32)
    c = cond_var.astype(jnp.bfloat16)
    for l in range(L):
        pre_s = jnp.einsum("bsc,cd->bsd", c, ws[l].astype(jnp.bfloat16),
                           preferred_element_type=jnp.float32) + bs[l][None]
        pre_t = jnp.einsum("bsc,cd->bsd", c, wt[l].astype(jnp.bfloat16),
                           preferred_element_type=jnp.float32) + bt[l][None]
        z = z * jnp.exp(jnp.tanh(pre_s)) + pre_t
    return z


if __name__ == "__main__":
    # Small, deterministic synthetic setup.
    B, S, D, Dc, L = 2, 8, 32, 16, 3

    key = jax.random.PRNGKey(0)
    k_x, k_c, k_ws, k_bs, k_wt, k_bt = jax.random.split(key, 6)

    x = jax.random.normal(k_x, (B, S, D), dtype=jnp.float32)
    cond_var = jax.random.normal(k_c, (B, S, Dc), dtype=jnp.float32)

    # Deterministic "reset_parameters": small random conditioner weights.
    ws = 0.1 * jax.random.normal(k_ws, (L, Dc, D), dtype=jnp.float32)
    bs = 0.1 * jax.random.normal(k_bs, (L, 1, D), dtype=jnp.float32)
    wt = 0.1 * jax.random.normal(k_wt, (L, Dc, D), dtype=jnp.float32)
    bt = 0.1 * jax.random.normal(k_bt, (L, 1, D), dtype=jnp.float32)

    out = conditional_transformed_forward(x, cond_var, ws, bs, wt, bt)
    out = jax.block_until_ready(out)

    ref = _reference_forward(x, cond_var, ws, bs, wt, bt)
    assert out.shape == (B, S, D)
    assert jnp.allclose(out, ref, atol=1e-3, rtol=1e-3), "kernel mismatch vs reference"

    print("KERNEL_OK")
</pallas_src>

<mosaic_0001>
module attributes {stable_mosaic.version = 11 : i64} {
  func.func @_flow_kernel(%arg0: i32, %arg1: memref<16x128xf32, #tpu.memory_space<vmem>>, %arg2: memref<16x128xbf16, #tpu.memory_space<vmem>>, %arg3: memref<128x768xbf16, #tpu.memory_space<vmem>>, %arg4: memref<1x768xf32, #tpu.memory_space<vmem>>, %arg5: memref<16x128xf32, #tpu.memory_space<vmem>>) attributes {dimension_semantics = [#tpu.dimension_semantics<parallel>], iteration_bounds = array<i64: 1>, scalar_prefetch = 0 : i64, scratch_operands = 0 : i64, tpu.core_type = #tpu.core_type<tc>, window_params = [{transform_indices = @transform_0, window_bounds = array<i64: 16, 128>}, {transform_indices = @transform_1, window_bounds = array<i64: 16, 128>}, {pipeline_mode = #tpu.pipeline_mode<synchronous>, transform_indices = @transform_2, window_bounds = array<i64: 128, 768>}, {pipeline_mode = #tpu.pipeline_mode<synchronous>, transform_indices = @transform_3, window_bounds = array<i64: 1, 768>}, {transform_indices = @transform_4, window_bounds = array<i64: 16, 128>}]} {
    %c0 = arith.constant 0 : index
    %c0_0 = arith.constant 0 : index
    %0 = vector.load %arg1[%c0, %c0_0] : memref<16x128xf32, #tpu.memory_space<vmem>>, vector<16x128xf32>
    %c0_1 = arith.constant 0 : index
    %c0_2 = arith.constant 0 : index
    %1 = vector.load %arg2[%c0_1, %c0_2] : memref<16x128xbf16, #tpu.memory_space<vmem>>, vector<16x128xbf16>
    %c0_3 = arith.constant 0 : index
    %c0_4 = arith.constant 0 : index
    %2 = vector.load %arg3[%c0_3, %c0_4] : memref<128x768xbf16, #tpu.memory_space<vmem>>, vector<128x768xbf16>
    %cst = arith.constant dense<0.000000e+00> : vector<16x768xf32>
    %3 = tpu.matmul %1, %2, %cst {dimension_numbers = #tpu.dot_dimension_numbers<[1], [0], [0], [1], [0, 0, 1, 1], [], []>} : vector<16x128xbf16>, vector<128x768xbf16>, vector<16x768xf32> -> vector<16x768xf32>
    %c0_5 = arith.constant 0 : index
    %c0_6 = arith.constant 0 : index
    %4 = vector.load %arg4[%c0_5, %c0_6] : memref<1x768xf32, #tpu.memory_space<vmem>>, vector<1x768xf32>
    %5 = vector.broadcast %4 : vector<1x768xf32> to vector<16x768xf32>
    %6 = arith.addf %3, %5 : vector<16x768xf32>
    %7 = vector.extract_strided_slice %6 {offsets = [0, 0], sizes = [16, 128], strides = [1, 1]} : vector<16x768xf32> to vector<16x128xf32>
    %8 = vector.extract_strided_slice %6 {offsets = [0, 384], sizes = [16, 128], strides = [1, 1]} : vector<16x768xf32> to vector<16x128xf32>
    %9 = math.tanh %7 : vector<16x128xf32>
    %10 = math.exp %9 : vector<16x128xf32>
    %11 = arith.mulf %0, %10 : vector<16x128xf32>
    %12 = arith.addf %11, %8 : vector<16x128xf32>
    %13 = vector.extract_strided_slice %6 {offsets = [0, 128], sizes = [16, 128], strides = [1, 1]} : vector<16x768xf32> to vector<16x128xf32>
    %14 = vector.extract_strided_slice %6 {offsets = [0, 512], sizes = [16, 128], strides = [1, 1]} : vector<16x768xf32> to vector<16x128xf32>
    %15 = math.tanh %13 : vector<16x128xf32>
    %16 = math.exp %15 : vector<16x128xf32>
    %17 = arith.mulf %12, %16 : vector<16x128xf32>
    %18 = arith.addf %17, %14 : vector<16x128xf32>
    %19 = vector.extract_strided_slice %6 {offsets = [0, 256], sizes = [16, 128], strides = [1, 1]} : vector<16x768xf32> to vector<16x128xf32>
    %20 = vector.extract_strided_slice %6 {offsets = [0, 640], sizes = [16, 128], strides = [1, 1]} : vector<16x768xf32> to vector<16x128xf32>
    %21 = math.tanh %19 : vector<16x128xf32>
    %22 = math.exp %21 : vector<16x128xf32>
    %23 = arith.mulf %18, %22 : vector<16x128xf32>
    %24 = arith.addf %23, %20 : vector<16x128xf32>
    %c0_7 = arith.constant 0 : index
    %c0_8 = arith.constant 0 : index
    %25 = vector.load %arg5[%c0_7, %c0_8] : memref<16x128xf32, #tpu.memory_space<vmem>>, vector<16x128xf32>
    tpu.vector_store %arg5[%c0_7, %c0_8], %24 {strides = array<i32>} : memref<16x128xf32, #tpu.memory_space<vmem>>, vector<16x128xf32>,
    return
  }
  func.func @transform_0(%arg0: i32) -> (i32, i32) {
    %c0_i32 = arith.constant 0 : i32
    %c0_i32_0 = arith.constant 0 : i32
    return %arg0, %c0_i32 : i32, i32
  }
  func.func @transform_1(%arg0: i32) -> (i32, i32) {
    %c0_i32 = arith.constant 0 : i32
    %c0_i32_0 = arith.constant 0 : i32
    return %arg0, %c0_i32 : i32, i32
  }
  func.func @transform_2(%arg0: i32) -> (i32, i32) {
    %c0_i32 = arith.constant 0 : i32
    %c0_i32_0 = arith.constant 0 : i32
    %c0_i32_1 = arith.constant 0 : i32
    return %c0_i32, %c0_i32_0 : i32, i32
  }
  func.func @transform_3(%arg0: i32) -> (i32, i32) {
    %c0_i32 = arith.constant 0 : i32
    %c0_i32_0 = arith.constant 0 : i32
    %c0_i32_1 = arith.constant 0 : i32
    return %c0_i32, %c0_i32_0 : i32, i32
  }
  func.func @transform_4(%arg0: i32) -> (i32, i32) {
    %c0_i32 = arith.constant 0 : i32
    %c0_i32_0 = arith.constant 0 : i32
    return %arg0, %c0_i32 : i32, i32
  }
}

</mosaic_0001>

<llo_original>
// kernel: tpu_custom_call.1
$region0: #{tpu_custom_call.1}
  #allocation0 [shape = 'u32[]', space=smem, size = 0x4, offset = 0x4, fixed_abs, tag = 'smem constant byte address 0x4 - core index']
  #allocation1 [shape = 'u32[144,128]{1,0:T(1,128)}', space=vmem, size = 0x12000, scoped, tag = 'internal scratch']
  %s0 = inlined_call_operand.hbm [shape: f32[16,128], index: 0, kind: input, shape index: {}]
  %s1 = inlined_call_operand.hbm [shape: bf16[16,128], index: 1, kind: input, shape index: {}]
  %s2 = inlined_call_operand.hbm [shape: bf16[128,768], index: 2, kind: input, shape index: {}]
  %s3 = inlined_call_operand.vmem [shape: f32[1,768], index: 3, kind: input, shape index: {}]
  %s4 = inlined_call_operand.hbm [shape: f32[16,128], index: 4, kind: output, shape index: {}]
  %s5 = sld [smem:[#allocation0]]
  $region38: #{tpu_custom_call.1} parent=0
    _
  %s7 = ssub.s32 1, %s5
  %s8 = scalar_select 0, %s7, %s5
  $region1: #{tpu_custom_call.1} parent=0
    #allocation2 [shape = 'u8[8192]{0}', space=vmem, size = 0x2000, scoped, tag = 'input window, operand 0, single buffered']
    #allocation3 [shape = 's32[1]{0}', space=sflag, size = 0x4, scoped, tag = 'scoped memory for tpu_custom_call.1']
    #allocation4 [shape = 's32[1]{0}', space=sflag, size = 0x4, scoped, tag = 'scoped memory for tpu_custom_call.1']
    #allocation5 [shape = 'u8[4096]{0}', space=vmem, size = 0x1000, scoped, tag = 'input window, operand 1, single buffered']
    #allocation6 [shape = 's32[1]{0}', space=sflag, size = 0x4, scoped, tag = 'scoped memory for tpu_custom_call.1']
    #allocation7 [shape = 'u8[196608]{0}', space=vmem, size = 0x30000, scoped, tag = 'input window, operand 2, single buffered']
    #allocation8 [shape = 'u8[8192]{0}', space=vmem, size = 0x2000, scoped, tag = 'output window, operand 0, single buffered']
    %9 = vsyncpa [#allocation3], 0
    %10 = vsyncpa [#allocation6], 0
    %11 = vsyncpa [#allocation4], 0
    // Predicated region
    $region2: #{tpu_custom_call.1} parent=1 // pred_check
      _
    $region3: #{tpu_custom_call.1} parent=1 // pred_check_branch
      %13 = sbr.rel (0) target = $region5
    $region4: #{tpu_custom_call.1} parent=1 // pred_region
      %s15 = ssub.s32 256, 256
      %16 = vsyncadd [#allocation3], %s15
      %s17 = sshll.u32 [#allocation2], 4
      %s18 = int_to_ptr.vmem [resolvable:$true] %s17
      %23 = dma.hbm_to_vmem [thread:$0]  %s0, 256, %s18, [#allocation3], 128, 128, 8
    $region5: #{tpu_custom_call.1} parent=1 // pred_fallthru
      _
    // Predicated region
    $region6: #{tpu_custom_call.1} parent=1 // pred_check
      _
    $region7: #{tpu_custom_call.1} parent=1 // pred_check_branch
      %25 = sbr.rel (0) target = $region9
    $region8: #{tpu_custom_call.1} parent=1 // pred_region
      %s27 = ssub.s32 128, 128
      %28 = vsyncadd [#allocation6], %s27
      %s29 = sshll.u32 [#allocation5], 4
      %s30 = int_to_ptr.vmem [resolvable:$true] %s29
      %35 = dma.hbm_to_vmem [thread:$0]  %s1, 128, %s30, [#allocation6], 64, 64, 4
    $region9: #{tpu_custom_call.1} parent=1 // pred_fallthru
      _
    // Predicated region
    $region10: #{tpu_custom_call.1} parent=1 // pred_check
      _
    $region11: #{tpu_custom_call.1} parent=1 // pred_check_branch
      %37 = sbr.rel (0) target = $region13
    $region12: #{tpu_custom_call.1} parent=1 // pred_region
      %s39 = ssub.s32 6144, 6144
      %40 = vsyncadd [#allocation6], %s39
      %s41 = sshll.u32 [#allocation7], 4
      %s42 = int_to_ptr.vmem [resolvable:$true] %s41
      %47 = dma.hbm_to_vmem [thread:$0]  %s2, 6144, %s42, [#allocation6], 384, 384, 24
    $region13: #{tpu_custom_call.1} parent=1 // pred_fallthru
      _
    // Predicated region
    $region14: #{tpu_custom_call.1} parent=1 // pred_check
      _
    $region15: #{tpu_custom_call.1} parent=1 // pred_check_branch
      %49 = sbr.rel (0) target = $region17
    $region16: #{tpu_custom_call.1} parent=1 // pred_region
      _
    $region17: #{tpu_custom_call.1} parent=1 // pred_fallthru
      _
    // Predicated region
    $region18: #{tpu_custom_call.1} parent=1 // pred_check
      _
    $region19: #{tpu_custom_call.1} parent=1 // pred_check_branch
      %51 = sbr.rel (0) target = $region21
    $region20: #{tpu_custom_call.1} parent=1 // pred_region
      %52 = dma.done [#allocation3], 256
    $region21: #{tpu_custom_call.1} parent=1 // pred_fallthru
      _
    // Predicated region
    $region22: #{tpu_custom_call.1} parent=1 // pred_check
      _
    $region23: #{tpu_custom_call.1} parent=1 // pred_check_branch
      %54 = sbr.rel (0) target = $region25
    $region24: #{tpu_custom_call.1} parent=1 // pred_region
      %55 = dma.done [#allocation6], 128
    $region25: #{tpu_custom_call.1} parent=1 // pred_fallthru
      _
    // Predicated region
    $region26: #{tpu_custom_call.1} parent=1 // pred_check
      _
    $region27: #{tpu_custom_call.1} parent=1 // pred_check_branch
      %57 = sbr.rel (0) target = $region29
    $region28: #{tpu_custom_call.1} parent=1 // pred_region
      %58 = dma.done [#allocation6], 6144
    $region29: #{tpu_custom_call.1} parent=1 // pred_fallthru
      _
    %v60 = vld [vmem:[#allocation2] sm:$0xff]
    %v61 = vld [vmem:[#allocation2 + $0x8] sm:$0xff]
    %v62 = vld [vmem:[#allocation5] sm:$0xf]
    %v63 = vld [vmem:[#allocation5 + $0x4] sm:$0xf]
    %v64 = vld [vmem:[#allocation7] sm:$0xff]
    %v65 = vld [vmem:[#allocation7 + $0x8] sm:$0xff]
    %v66 = vld [vmem:[#allocation7 + $0x10] sm:$0xff]
    %v67 = vld [vmem:[#allocation7 + $0x18] sm:$0xff]
    %v68 = vld [vmem:[#allocation7 + $0x20] sm:$0xff]
    %v69 = vld [vmem:[#allocation7 + $0x28] sm:$0xff]
    %v70 = vld [vmem:[#allocation7 + $0x30] sm:$0xff]
    %v71 = vld [vmem:[#allocation7 + $0x38] sm:$0xff]
    %v72 = vld [vmem:[#allocation7 + $0x40] sm:$0xff]
    %v73 = vld [vmem:[#allocation7 + $0x48] sm:$0xff]
    %v74 = vld [vmem:[#allocation7 + $0x50] sm:$0xff]
    %v75 = vld [vmem:[#allocation7 + $0x58] sm:$0xff]
    %v76 = vld [vmem:[#allocation7 + $0x60] sm:$0xff]
    %v77 = vld [vmem:[#allocation7 + $0x68] sm:$0xff]
    %v78 = vld [vmem:[#allocation7 + $0x70] sm:$0xff]
    %v79 = vld [vmem:[#allocation7 + $0x78] sm:$0xff]
    %v80 = vld [vmem:[#allocation7 + $0x80] sm:$0xff]
    %v81 = vld [vmem:[#allocation7 + $0x88] sm:$0xff]
    %v82 = vld [vmem:[#allocation7 + $0x90] sm:$0xff]
    %v83 = vld [vmem:[#allocation7 + $0x98] sm:$0xff]
    %v84 = vld [vmem:[#allocation7 + $0xa0] sm:$0xff]
    %v85 = vld [vmem:[#allocation7 + $0xa8] sm:$0xff]
    %v86 = vld [vmem:[#allocation7 + $0xb0] sm:$0xff]
    %v87 = vld [vmem:[#allocation7 + $0xb8] sm:$0xff]
    %v88 = vld [vmem:[#allocation7 + $0xc0] sm:$0xff]
    %v89 = vld [vmem:[#allocation7 + $0xc8] sm:$0xff]
    %v90 = vld [vmem:[#allocation7 + $0xd0] sm:$0xff]
    %v91 = vld [vmem:[#allocation7 + $0xd8] sm:$0xff]
    %v92 = vld [vmem:[#allocation7 + $0xe0] sm:$0xff]
    %v93 = vld [vmem:[#allocation7 + $0xe8] sm:$0xff]
    %v94 = vld [vmem:[#allocation7 + $0xf0] sm:$0xff]
    %v95 = vld [vmem:[#allocation7 + $0xf8] sm:$0xff]
    %v96 = vld [vmem:[#allocation7 + $0x100] sm:$0xff]
    %v97 = vld [vmem:[#allocation7 + $0x108] sm:$0xff]
    %v98 = vld [vmem:[#allocation7 + $0x110] sm:$0xff]
    %v99 = vld [vmem:[#allocation7 + $0x118] sm:$0xff]
    %v100 = vld [vmem:[#allocation7 + $0x120] sm:$0xff]
    %v101 = vld [vmem:[#allocation7 + $0x128] sm:$0xff]
    %v102 = vld [vmem:[#allocation7 + $0x130] sm:$0xff]
    %v103 = vld [vmem:[#allocation7 + $0x138] sm:$0xff]
    %v104 = vld [vmem:[#allocation7 + $0x140] sm:$0xff]
    %v105 = vld [vmem:[#allocation7 + $0x148] sm:$0xff]
    %v106 = vld [vmem:[#allocation7 + $0x150] sm:$0xff]
    %v107 = vld [vmem:[#allocation7 + $0x158] sm:$0xff]
    %v108 = vld [vmem:[#allocation7 + $0x160] sm:$0xff]
    %v109 = vld [vmem:[#allocation7 + $0x168] sm:$0xff]
    %v110 = vld [vmem:[#allocation7 + $0x170] sm:$0xff]
    %v111 = vld [vmem:[#allocation7 + $0x178] sm:$0xff]
    %v112 = vld [vmem:[%s3] sm:$0x3f]
    %v114 = vlaneseq
    %v115 = vshrl.u32 %v114, 7
    %v116 = vsub.s32 0, %v115
    %v117 = vrot.slane %v112, %v116
    %v118 = vlaneseq
    %v119 = vshrl.u32 %v118, 7
    %v120 = vsub.s32 1, %v119
    %v121 = vrot.slane %v112, %v120
    %v122 = vlaneseq
    %v123 = vshrl.u32 %v122, 7
    %v124 = vsub.s32 2, %v123
    %v125 = vrot.slane %v112, %v124
    %v126 = vlaneseq
    %v127 = vshrl.u32 %v126, 7
    %v128 = vsub.s32 3, %v127
    %v129 = vrot.slane %v112, %v128
    %v130 = vlaneseq
    %v131 = vshrl.u32 %v130, 7
    %v132 = vsub.s32 4, %v131
    %v133 = vrot.slane %v112, %v132
    %v134 = vlaneseq
    %v135 = vshrl.u32 %v134, 7
    %v136 = vsub.s32 5, %v135
    %v137 = vrot.slane %v112, %v136
    %v146 = vunpack.c.l.b16 %v62
    %v147 = vunpack.c.l.b16 %v63
    %v148 = vpack.c.b16 %v147, %v146
    %v198 = vunpack.c.l.b16 %v64
    %v199 = vunpack.c.h.b16 %v64
    %v200 = vunpack.c.l.b16 %v65
    %v201 = vunpack.c.h.b16 %v65
    %v202 = vunpack.c.l.b16 %v66
    %v203 = vunpack.c.h.b16 %v66
    %v204 = vunpack.c.l.b16 %v67
    %v205 = vunpack.c.h.b16 %v67
    %v206 = vunpack.c.l.b16 %v68
    %v207 = vunpack.c.h.b16 %v68
    %v208 = vunpack.c.l.b16 %v69
    %v209 = vunpack.c.h.b16 %v69
    %v210 = vunpack.c.l.b16 %v70
    %v211 = vunpack.c.h.b16 %v70
    %v212 = vunpack.c.l.b16 %v71
    %v213 = vunpack.c.h.b16 %v71
    %v214 = vunpack.c.l.b16 %v72
    %v215 = vunpack.c.h.b16 %v72
    %v216 = vunpack.c.l.b16 %v73
    %v217 = vunpack.c.h.b16 %v73
    %v218 = vunpack.c.l.b16 %v74
    %v219 = vunpack.c.h.b16 %v74
    %v220 = vunpack.c.l.b16 %v75
    %v221 = vunpack.c.h.b16 %v75
    %v222 = vunpack.c.l.b16 %v76
    %v223 = vunpack.c.h.b16 %v76
    %v224 = vunpack.c.l.b16 %v77
    %v225 = vunpack.c.h.b16 %v77
    %v226 = vunpack.c.l.b16 %v78
    %v227 = vunpack.c.h.b16 %v78
    %v228 = vunpack.c.l.b16 %v79
    %v229 = vunpack.c.h.b16 %v79
    %v230 = vunpack.c.l.b16 %v80
    %v231 = vunpack.c.h.b16 %v80
    %v232 = vunpack.c.l.b16 %v81
    %v233 = vunpack.c.h.b16 %v81
    %v234 = vunpack.c.l.b16 %v82
    %v235 = vunpack.c.h.b16 %v82
    %v236 = vunpack.c.l.b16 %v83
    %v237 = vunpack.c.h.b16 %v83
    %v238 = vunpack.c.l.b16 %v84
    %v239 = vunpack.c.h.b16 %v84
    %v240 = vunpack.c.l.b16 %v85
    %v241 = vunpack.c.h.b16 %v85
    %v242 = vunpack.c.l.b16 %v86
    %v243 = vunpack.c.h.b16 %v86
    %v244 = vunpack.c.l.b16 %v87
    %v245 = vunpack.c.h.b16 %v87
    %v246 = vunpack.c.l.b16 %v88
    %v247 = vunpack.c.h.b16 %v88
    %v248 = vunpack.c.l.b16 %v89
    %v249 = vunpack.c.h.b16 %v89
    %v250 = vunpack.c.l.b16 %v90
    %v251 = vunpack.c.h.b16 %v90
    %v252 = vunpack.c.l.b16 %v91
    %v253 = vunpack.c.h.b16 %v91
    %v254 = vunpack.c.l.b16 %v92
    %v255 = vunpack.c.h.b16 %v92
    %v256 = vunpack.c.l.b16 %v93
    %v257 = vunpack.c.h.b16 %v93
    %v258 = vunpack.c.l.b16 %v94
    %v259 = vunpack.c.h.b16 %v94
    %v260 = vunpack.c.l.b16 %v95
    %v261 = vunpack.c.h.b16 %v95
    %v262 = vunpack.c.l.b16 %v96
    %v263 = vunpack.c.h.b16 %v96
    %v264 = vunpack.c.l.b16 %v97
    %v265 = vunpack.c.h.b16 %v97
    %v266 = vunpack.c.l.b16 %v98
    %v267 = vunpack.c.h.b16 %v98
    %v268 = vunpack.c.l.b16 %v99
    %v269 = vunpack.c.h.b16 %v99
    %v270 = vunpack.c.l.b16 %v100
    %v271 = vunpack.c.h.b16 %v100
    %v272 = vunpack.c.l.b16 %v101
    %v273 = vunpack.c.h.b16 %v101
    %v274 = vunpack.c.l.b16 %v102
    %v275 = vunpack.c.h.b16 %v102
    %v276 = vunpack.c.l.b16 %v103
    %v277 = vunpack.c.h.b16 %v103
    %v278 = vunpack.c.l.b16 %v104
    %v279 = vunpack.c.h.b16 %v104
    %v280 = vunpack.c.l.b16 %v105
    %v281 = vunpack.c.h.b16 %v105
    %v282 = vunpack.c.l.b16 %v106
    %v283 = vunpack.c.h.b16 %v106
    %v284 = vunpack.c.l.b16 %v107
    %v285 = vunpack.c.h.b16 %v107
    %v286 = vunpack.c.l.b16 %v108
    %v287 = vunpack.c.h.b16 %v108
    %v288 = vunpack.c.l.b16 %v109
    %v289 = vunpack.c.h.b16 %v109
    %v290 = vunpack.c.l.b16 %v110
    %v291 = vunpack.c.h.b16 %v110
    %v292 = vunpack.c.l.b16 %v111
    %v293 = vunpack.c.h.b16 %v111
    %v294 = vpack.c.b16 %v204, %v198
    %v295 = vpack.c.b16 %v205, %v199
    %v296 = vpack.c.b16 %v206, %v200
    %v297 = vpack.c.b16 %v207, %v201
    %v298 = vpack.c.b16 %v208, %v202
    %v299 = vpack.c.b16 %v209, %v203
    %v300 = vpack.c.b16 %v216, %v210
    %v301 = vpack.c.b16 %v217, %v211
    %v302 = vpack.c.b16 %v218, %v212
    %v303 = vpack.c.b16 %v219, %v213
    %v304 = vpack.c.b16 %v220, %v214
    %v305 = vpack.c.b16 %v221, %v215
    %v306 = vpack.c.b16 %v228, %v222
    %v307 = vpack.c.b16 %v229, %v223
    %v308 = vpack.c.b16 %v230, %v224
    %v309 = vpack.c.b16 %v231, %v225
    %v310 = vpack.c.b16 %v232, %v226
    %v311 = vpack.c.b16 %v233, %v227
    %v312 = vpack.c.b16 %v240, %v234
    %v313 = vpack.c.b16 %v241, %v235
    %v314 = vpack.c.b16 %v242, %v236
    %v315 = vpack.c.b16 %v243, %v237
    %v316 = vpack.c.b16 %v244, %v238
    %v317 = vpack.c.b16 %v245, %v239
    %v318 = vpack.c.b16 %v252, %v246
    %v319 = vpack.c.b16 %v253, %v247
    %v320 = vpack.c.b16 %v254, %v248
    %v321 = vpack.c.b16 %v255, %v249
    %v322 = vpack.c.b16 %v256, %v250
    %v323 = vpack.c.b16 %v257, %v251
    %v324 = vpack.c.b16 %v264, %v258
    %v325 = vpack.c.b16 %v265, %v259
    %v326 = vpack.c.b16 %v266, %v260
    %v327 = vpack.c.b16 %v267, %v261
    %v328 = vpack.c.b16 %v268, %v262
    %v329 = vpack.c.b16 %v269, %v263
    %v330 = vpack.c.b16 %v276, %v270
    %v331 = vpack.c.b16 %v277, %v271
    %v332 = vpack.c.b16 %v278, %v272
    %v333 = vpack.c.b16 %v279, %v273
    %v334 = vpack.c.b16 %v280, %v274
    %v335 = vpack.c.b16 %v281, %v275
    %v336 = vpack.c.b16 %v288, %v282
    %v337 = vpack.c.b16 %v289, %v283
    %v338 = vpack.c.b16 %v290, %v284
    %v339 = vpack.c.b16 %v291, %v285
    %v340 = vpack.c.b16 %v292, %v286
    %v341 = vpack.c.b16 %v293, %v287
    %390 = vmatprep.subr.bf16.mxu0 %v295
    %391 = vmatpush1.bf16.msra.mxu0 %v294
    %392 = vmatprep.subr.bf16.mxu0 %v301
    %393 = vmatpush1.bf16.msra.mxu0 %v300
    %394 = vmatprep.subr.bf16.mxu0 %v307
    %395 = vmatpush1.bf16.msra.mxu0 %v306
    %396 = vmatprep.subr.bf16.mxu0 %v313
    %397 = vmatpush1.bf16.msra.mxu0 %v312
    %398 = vmatprep.subr.bf16.mxu0 %v319
    %399 = vmatpush1.bf16.msra.mxu0 %v318
    %400 = vmatprep.subr.bf16.mxu0 %v325
    %401 = vmatpush1.bf16.msra.mxu0 %v324
    %402 = vmatprep.subr.bf16.mxu0 %v331
    %403 = vmatpush1.bf16.msra.mxu0 %v330
    %404 = vmatprep.subr.bf16.mxu0 %v337
    %405 = vmatpush1.bf16.msra.mxu0 %v336
    %406 = vmatprep.subr.bf16.mxu0 0
    %407 = vmatpush1.bf16.msra.mxu0 0
    %408 = vmatprep.subr.bf16.mxu0 0
    %409 = vmatpush1.bf16.msra.mxu0 0
    %410 = vmatprep.subr.bf16.mxu0 0
    %411 = vmatpush1.bf16.msra.mxu0 0
    %412 = vmatprep.subr.bf16.mxu0 0
    %413 = vmatpush1.bf16.msra.mxu0 0
    %414 = vmatprep.subr.bf16.mxu0 0
    %415 = vmatpush1.bf16.msra.mxu0 0
    %416 = vmatprep.subr.bf16.mxu0 0
    %417 = vmatpush1.bf16.msra.mxu0 0
    %418 = vmatprep.subr.bf16.mxu0 0
    %419 = vmatpush1.bf16.msra.mxu0 0
    %420 = vmatprep.subr.bf16.mxu0 0
    %421 = vmatpush1.bf16.msra.mxu0 0
    %422 = vmatprep.mubr.bf16.mxu0 0
    %423 = vmatmul.mubr.bf16.gmra.mrb[0].mxu0 %v148
    %v424 = vpop.f32.mrb[0].mxu0
    %v425 = vadd.f32 %v117, %v424
    %v426 = vpop.f32.mrb[0].mxu0
    %v427 = vadd.f32 %v121, %v426
    %v428 = vpop.f32.mrb[0].mxu0
    %v429 = vadd.f32 %v117, %v428
    %v430 = vpop.f32.mrb[0].mxu0
    %v431 = vadd.f32 %v121, %v430
    %432 = vdwg.mxu0
    %433 = vmatprep.subr.bf16.mxu0 %v297
    %434 = vmatpush1.bf16.msra.mxu0 %v296
    %435 = vmatprep.subr.bf16.mxu0 %v303
    %436 = vmatpush1.bf16.msra.mxu0 %v302
    %437 = vmatprep.subr.bf16.mxu0 %v309
    %438 = vmatpush1.bf16.msra.mxu0 %v308
    %439 = vmatprep.subr.bf16.mxu0 %v315
    %440 = vmatpush1.bf16.msra.mxu0 %v314
    %441 = vmatprep.subr.bf16.mxu0 %v321
    %442 = vmatpush1.bf16.msra.mxu0 %v320
    %443 = vmatprep.subr.bf16.mxu0 %v327
    %444 = vmatpush1.bf16.msra.mxu0 %v326
    %445 = vmatprep.subr.bf16.mxu0 %v333
    %446 = vmatpush1.bf16.msra.mxu0 %v332
    %447 = vmatprep.subr.bf16.mxu0 %v339
    %448 = vmatpush1.bf16.msra.mxu0 %v338
    %449 = vmatprep.subr.bf16.mxu0 0
    %450 = vmatpush1.bf16.msra.mxu0 0
    %451 = vmatprep.subr.bf16.mxu0 0
    %452 = vmatpush1.bf16.msra.mxu0 0
    %453 = vmatprep.subr.bf16.mxu0 0
    %454 = vmatpush1.bf16.msra.mxu0 0
    %455 = vmatprep.subr.bf16.mxu0 0
    %456 = vmatpush1.bf16.msra.mxu0 0
    %457 = vmatprep.subr.bf16.mxu0 0
    %458 = vmatpush1.bf16.msra.mxu0 0
    %459 = vmatprep.subr.bf16.mxu0 0
    %460 = vmatpush1.bf16.msra.mxu0 0
    %461 = vmatprep.subr.bf16.mxu0 0
    %462 = vmatpush1.bf16.msra.mxu0 0
    %463 = vmatprep.subr.bf16.mxu0 0
    %464 = vmatpush1.bf16.msra.mxu0 0
    %465 = vmatprep.mubr.bf16.mxu0 0
    %466 = vmatmul.mubr.bf16.gmra.mrb[0].mxu0 %v148
    %v467 = vpop.f32.mrb[0].mxu0
    %v468 = vadd.f32 %v125, %v467
    %v469 = vpop.f32.mrb[0].mxu0
    %v470 = vadd.f32 %v129, %v469
    %v471 = vpop.f32.mrb[0].mxu0
    %v472 = vadd.f32 %v125, %v471
    %v473 = vpop.f32.mrb[0].mxu0
    %v474 = vadd.f32 %v129, %v473
    %475 = vdwg.mxu0
    %476 = vmatprep.subr.bf16.mxu0 %v299
    %477 = vmatpush1.bf16.msra.mxu0 %v298
    %478 = vmatprep.subr.bf16.mxu0 %v305
    %479 = vmatpush1.bf16.msra.mxu0 %v304
    %480 = vmatprep.subr.bf16.mxu0 %v311
    %481 = vmatpush1.bf16.msra.mxu0 %v310
    %482 = vmatprep.subr.bf16.mxu0 %v317
    %483 = vmatpush1.bf16.msra.mxu0 %v316
    %484 = vmatprep.subr.bf16.mxu0 %v323
    %485 = vmatpush1.bf16.msra.mxu0 %v322
    %486 = vmatprep.subr.bf16.mxu0 %v329
    %487 = vmatpush1.bf16.msra.mxu0 %v328
    %488 = vmatprep.subr.bf16.mxu0 %v335
    %489 = vmatpush1.bf16.msra.mxu0 %v334
    %490 = vmatprep.subr.bf16.mxu0 %v341
    %491 = vmatpush1.bf16.msra.mxu0 %v340
    %492 = vmatprep.subr.bf16.mxu0 0
    %493 = vmatpush1.bf16.msra.mxu0 0
    %494 = vmatprep.subr.bf16.mxu0 0
    %495 = vmatpush1.bf16.msra.mxu0 0
    %496 = vmatprep.subr.bf16.mxu0 0
    %497 = vmatpush1.bf16.msra.mxu0 0
    %498 = vmatprep.subr.bf16.mxu0 0
    %499 = vmatpush1.bf16.msra.mxu0 0
    %500 = vmatprep.subr.bf16.mxu0 0
    %501 = vmatpush1.bf16.msra.mxu0 0
    %502 = vmatprep.subr.bf16.mxu0 0
    %503 = vmatpush1.bf16.msra.mxu0 0
    %504 = vmatprep.subr.bf16.mxu0 0
    %505 = vmatpush1.bf16.msra.mxu0 0
    %506 = vmatprep.subr.bf16.mxu0 0
    %507 = vmatpush1.bf16.msra.mxu0 0
    %508 = vmatprep.mubr.bf16.mxu0 0
    %509 = vmatmul.mubr.bf16.gmra.mrb[0].mxu0 %v148
    %v510 = vpop.f32.mrb[0].mxu0
    %v511 = vadd.f32 %v133, %v510
    %v512 = vpop.f32.mrb[0].mxu0
    %v513 = vadd.f32 %v137, %v512
    %v514 = vpop.f32.mrb[0].mxu0
    %v515 = vadd.f32 %v133, %v514
    %v516 = vpop.f32.mrb[0].mxu0
    %v517 = vadd.f32 %v137, %v516
    %518 = vdwg.mxu0
    %v519 = vtanh.pop %v425
    %v520 = vtanh.pop %v429
    %v521 = vmul.f32 %v519, 1.442695
    %v522 = vpow.pop %v521
    %v523 = vmul.f32 %v520, 1.442695
    %v524 = vpow.pop %v523
    %v525 = vmul.f32 %v60, %v522
    %v526 = vmul.f32 %v61, %v524
    %v527 = vadd.f32 %v525, %v470
    %v528 = vadd.f32 %v526, %v474
    %v529 = vtanh.pop %v427
    %v530 = vtanh.pop %v431
    %v531 = vmul.f32 %v529, 1.442695
    %v532 = vpow.pop %v531
    %v533 = vmul.f32 %v530, 1.442695
    %v534 = vpow.pop %v533
    %v535 = vmul.f32 %v527, %v532
    %v536 = vmul.f32 %v528, %v534
    %v537 = vadd.f32 %v535, %v511
    %v538 = vadd.f32 %v536, %v515
    %v539 = vtanh.pop %v468
    %v540 = vtanh.pop %v472
    %v541 = vmul.f32 %v539, 1.442695
    %v542 = vpow.pop %v541
    %v543 = vmul.f32 %v540, 1.442695
    %v544 = vpow.pop %v543
    %v545 = vmul.f32 %v537, %v542
    %v546 = vmul.f32 %v538, %v544
    %v547 = vadd.f32 %v545, %v513
    %v548 = vadd.f32 %v546, %v517
    %549 = vst [vmem:[#allocation8] sm:$0xff] %v547
    %550 = vst [vmem:[#allocation8 + $0x8] sm:$0xff] %v548
    // Predicated region
    $region30: #{tpu_custom_call.1} parent=1 // pred_check
      _
    $region31: #{tpu_custom_call.1} parent=1 // pred_check_branch
      %552 = sbr.rel (0) target = $region33
    $region32: #{tpu_custom_call.1} parent=1 // pred_region
      %s554 = ssub.s32 256, 256
      %555 = vsyncadd [#allocation4], %s554
      %s556 = sshll.u32 [#allocation8], 4
      %s557 = int_to_ptr.vmem [resolvable:$true] %s556
      %562 = dma.vmem_to_hbm [thread:$0]  %s557, 256, %s4, [#allocation4], 128, 128, 8
    $region33: #{tpu_custom_call.1} parent=1 // pred_fallthru
      _
    // Predicated region
    $region34: #{tpu_custom_call.1} parent=1 // pred_check
      _
    $region35: #{tpu_custom_call.1} parent=1 // pred_check_branch
      %564 = sbr.rel (0) target = $region37
    $region36: #{tpu_custom_call.1} parent=1 // pred_region
      %565 = dma.done [#allocation4], 256
    $region37: #{tpu_custom_call.1} parent=1 // pred_fallthru
      _
    %566 = vsyncpa [#allocation3], 1
    %567 = vsyncpa [#allocation6], 1
    %568 = vsyncpa [#allocation4], 1

</llo_original>
